<compile_context>
chip_gen: v7x
topology: tpu7x:2x2x1
jax: 0.10.0
libtpu: 0.0.40
codegen_flags: <defaults>
</compile_context>

<pallas_src>
import functools

import numpy as np
import jax
import jax.numpy as jnp
from jax import lax
from jax.experimental import pallas as pl
from jax.experimental.pallas import tpu as pltpu


def _round_up(x, m):
    return ((x + m - 1) // m) * m


def _pad_to(x, shape, value=0):
    pads = [(0, t - s) for s, t in zip(x.shape, shape)]
    if all(p == (0, 0) for p in pads):
        return x
    return jnp.pad(x, pads, constant_values=value)


# ----------------------------------------------------------------------------
# Pallas kernel: push/pull tag loss for a block of TB images
# ----------------------------------------------------------------------------
def _tag_loss_kernel(pred_ref, inds_ref, w_ref, out_ref, *,
                     regu_thr, w_high, inv_c):
    f32 = jnp.float32
    eps = 1e-6
    tb, cp, n = pred_ref.shape          # (TB, Cp, Np), pred in bf16
    gp = w_ref.shape[1]                 # padded group count

    dn_bt = (((1,), (1,)), ((), ()))    # A @ B.T   (contract last dims)
    dn_tb = (((0,), (0,)), ((), ()))    # A.T @ B   (contract first dims)
    dn_ab = (((1,), (0,)), ((), ()))    # A @ B

    # ---------------- batched over all TB images of this grid step ----------
    inds = inds_ref[...]                                        # (tb, 1, N) i32
    gids = lax.broadcasted_iota(jnp.int32, (tb, gp, n), 1)
    member3 = (gids == inds).astype(f32)                        # (tb, gp, N)
    count = jnp.sum(member3, axis=2, keepdims=True)             # (tb, gp, 1)
    active = (count > 0.5).astype(f32)
    inv_count = active / jnp.maximum(count, 1.0)
    num = jnp.sum(active, axis=1, keepdims=True)                # (tb, 1, 1)

    pred3 = pred_ref[...].astype(f32)                           # (tb, cp, N)
    member2 = member3.reshape(tb * gp, n)
    pred2 = pred3.reshape(tb * cp, n)

    # one MXU group-sum matmul for the whole block (K = N); per-image sums
    # are the block-diagonal (gp, cp) blocks.
    gsum_all = lax.dot_general(member2, pred2, dn_bt,
                               preferred_element_type=f32)      # (tb*gp, tb*cp)
    tags_all = jnp.concatenate(
        [gsum_all[t * gp:(t + 1) * gp, t * cp:(t + 1) * cp] * inv_count[t]
         for t in range(tb)], axis=0)                           # (tb*gp, cp)

    # one Gram matmul for the whole block (K = cp)
    gram_all = lax.dot_general(tags_all, tags_all, dn_bt,
                               preferred_element_type=f32)      # (tb*gp, tb*gp)
    diag_col = jnp.sum(tags_all * tags_all, axis=1, keepdims=True)   # (tb*gp, 1)
    eye_big = (lax.broadcasted_iota(jnp.int32, (tb * gp, tb * gp), 0) ==
               lax.broadcasted_iota(jnp.int32, (tb * gp, tb * gp), 1)).astype(f32)
    diag_row = jnp.sum(gram_all * eye_big, axis=0, keepdims=True)    # (1, tb*gp)

    off_diag = (lax.broadcasted_iota(jnp.int32, (gp, gp), 0) !=
                lax.broadcasted_iota(jnp.int32, (gp, gp), 1)).astype(f32)
    ones_row = jnp.ones((1, gp), dtype=f32)

    push_acc = jnp.zeros((1, 1), f32)
    pull_acc = jnp.zeros((1, 1), f32)

    for t in range(tb):                                   # static unroll, tb small
        member_t = member3[t]                             # (gp, N)
        tags_t = tags_all[t * gp:(t + 1) * gp, :]         # (gp, cp)
        ic_t = inv_count[t]                               # (gp, 1)
        act_t = active[t]                                 # (gp, 1)
        num_t = num[t]                                    # (1, 1)
        w_t = w_ref[t].astype(f32)                        # (gp, gp+1)
        push_w = w_t[:, :gp]                              # (gp, gp)
        pull_col = w_t[:, gp:gp + 1]                      # (gp, 1)

        # ---- pull: exact per-anchor distance to its own group tag ---------
        tags_at = lax.dot_general(tags_t, member_t, dn_tb,
                                  preferred_element_type=f32)   # (cp, N), K=gp
        d = pred3[t] - tags_at
        cur = jnp.sum(d * d, axis=0, keepdims=True) * inv_c     # (1, N) XLU reduce
        cur = jnp.where(cur < regu_thr, 0.0, cur)
        pw_col = pull_col * ic_t                                # active folded in
        wvec = jnp.sum(member_t * pw_col, axis=0, keepdims=True)  # (1, N)
        pull_i = jnp.sum(cur * wvec, keepdims=True)             # (1, 1)

        # ---- push: pairwise squared distance between group mean tags ------
        gram_t = gram_all[t * gp:(t + 1) * gp, t * gp:(t + 1) * gp]
        dc = diag_col[t * gp:(t + 1) * gp, :]                   # (gp, 1)
        dr = diag_row[:, t * gp:(t + 1) * gp]                   # (1, gp)
        diff = jnp.maximum(dc + dr - 2.0 * gram_t, 0.0) * inv_c
        diff = diff * off_diag                                  # exact-zero diagonal
        push_mat = jnp.exp(-diff)
        m_mat = push_mat * jnp.where(push_mat < regu_thr, 0.0, push_w)
        # a^T M a via a tiny (gp,gp)@(gp,gp) matmul (activity mask in-kernel)
        act8 = act_t * ones_row                                 # (gp, gp)
        mv = lax.dot_general(m_mat, act8, dn_ab,
                             preferred_element_type=f32)        # (gp, gp)
        push_sum = jnp.sum(mv[:, 0:1] * act_t, keepdims=True)   # (1, 1)
        push_i = push_sum - num_t * w_high

        pull_acc = pull_acc + pull_i / (num_t + eps)
        push_acc = push_acc + push_i / ((num_t - 1.0) * num_t + eps) * 0.5

    # single lane-dense (8, 128) store: row 0 = push sum, row 1 = pull sum
    row = lax.broadcasted_iota(jnp.int32, (8, 128), 0)
    out_ref[0] = jnp.where(row == 0, push_acc,
                           jnp.where(row == 1, pull_acc, 0.0))


# ----------------------------------------------------------------------------
# Plain-JAX glue: IoU-based push/pull weights from (expanded) gt boxes
# (legacy mmdet "+1" area convention, matching get_weight)
# ----------------------------------------------------------------------------
def _iou_weights(boxes, expand, w_low, w_high):
    x1, y1, x2, y2 = boxes[:, 0], boxes[:, 1], boxes[:, 2], boxes[:, 3]
    h = y2 - y1 + 1.0
    w = x2 - x1 + 1.0
    ex1 = x1 - w * expand
    ex2 = x2 + w * expand
    ey1 = y1 - h * expand
    ey2 = y2 + h * expand
    area = (ex2 - ex1 + 1.0) * (ey2 - ey1 + 1.0)
    lt_x = jnp.maximum(ex1[:, None], ex1[None, :])
    lt_y = jnp.maximum(ey1[:, None], ey1[None, :])
    rb_x = jnp.minimum(ex2[:, None], ex2[None, :])
    rb_y = jnp.minimum(ey2[:, None], ey2[None, :])
    iw = jnp.maximum(rb_x - lt_x + 1.0, 0.0)
    ih = jnp.maximum(rb_y - lt_y + 1.0, 0.0)
    inter = iw * ih
    iou = inter / (area[:, None] + area[None, :] - inter)
    push_w = jnp.where(iou > 0, w_high, w_low).astype(jnp.float32)
    pull_w = jnp.where(jnp.sum(iou, axis=1) > 0, w_low, w_high).astype(jnp.float32)
    return push_w, pull_w


# ----------------------------------------------------------------------------
# Module-equivalent wrapper (forward pass of SimpleTagOffsetReguLoss)
# ----------------------------------------------------------------------------
def simple_tag_offset_regu_loss_pallas(pred, gt_inds, gt_bboxes, *,
                                       pull_weight=1.0, push_weight=1.0,
                                       regu_thr=1e-3, w_low=0.1, w_high=10.0,
                                       expand=0.25, iou_thr=0):
    # pred: (B, N, C) f32; gt_inds: (B, N) int (0-based, <0 = ignore);
    # gt_bboxes: (B, G, 4) f32
    del iou_thr  # unused by the reference computation as well
    pred = jnp.asarray(pred)
    B, N, C = pred.shape
    G = gt_bboxes.shape[1]

    # per-image IoU-derived weights (tiny; plain JAX)
    push_w, pull_w = jax.vmap(
        lambda b: _iou_weights(b.astype(jnp.float32), expand, w_low, w_high)
    )(gt_bboxes)                                               # (B,G,G), (B,G)

    inds32 = gt_inds.astype(jnp.int32)                         # (B, N)

    # lane-dense layout (N on lanes) + bf16 for the dominant HBM stream
    pred_t = jnp.transpose(pred, (0, 2, 1)).astype(jnp.bfloat16)  # (B, C, N)

    Cp = _round_up(C, 8)
    Np = _round_up(N, 128)
    Gp = _round_up(G, 8)

    # TB: >=2 grid steps when B>=2 (v7x megacore), capped by a VMEM budget.
    def _block_bytes(t):
        return t * (Cp * Np * 2 + Np * 4 + Gp * (Gp + 1) * 4)
    TB = max(1, min(8, (B + 1) // 2))
    while TB > 1 and _block_bytes(TB) > (4 << 20):
        TB -= 1
    Bp = _round_up(B, TB)
    nb = Bp // TB

    pred_t = _pad_to(pred_t, (Bp, Cp, Np))                     # zero pad
    inds = _pad_to(inds32.reshape(B, 1, N), (Bp, 1, Np), value=-1)

    # pack the (G,G) push weights and the (G,) pull weights into one slab:
    # lanes [0, Gp) = push_w, lane Gp = pull_w column.
    push_w = _pad_to(push_w, (B, Gp, Gp))
    pull_w = _pad_to(pull_w[:, :, None], (B, Gp, 1))
    w_packed = jnp.concatenate([push_w, pull_w], axis=2)       # (B, Gp, Gp+1)
    w_packed = _pad_to(w_packed, (Bp, Gp, Gp + 1))

    kernel = functools.partial(_tag_loss_kernel,
                               regu_thr=float(regu_thr),
                               w_high=float(w_high),
                               inv_c=1.0 / float(C))

    vmem_limit = int(min(64 * 2 ** 20, max(32 * 2 ** 20, 16 * _block_bytes(TB))))

    grid_spec = pltpu.PrefetchScalarGridSpec(
        num_scalar_prefetch=0,
        grid=(nb,),
        in_specs=[
            pl.BlockSpec((TB, Cp, Np), lambda i: (i, 0, 0)),
            pl.BlockSpec((TB, 1, Np), lambda i: (i, 0, 0)),
            pl.BlockSpec((TB, Gp, Gp + 1), lambda i: (i, 0, 0)),
        ],
        out_specs=pl.BlockSpec((1, 8, 128), lambda i: (i, 0, 0)),
    )

    out = pl.pallas_call(
        kernel,
        out_shape=jax.ShapeDtypeStruct((nb, 8, 128), jnp.float32),
        grid_spec=grid_spec,
        compiler_params=pltpu.CompilerParams(
            dimension_semantics=("parallel",),
            vmem_limit_bytes=vmem_limit),
    )(pred_t, inds, w_packed)

    push_loss = jnp.sum(out[:, 0, 0]) / B * push_weight
    pull_loss = jnp.sum(out[:, 1, 0]) / B * pull_weight
    return {'push_loss': push_loss, 'pull_loss': pull_loss}


# ----------------------------------------------------------------------------
# Pure-numpy reference (faithful to the PyTorch code) for verification
# ----------------------------------------------------------------------------
def _ref_bbox_overlaps(b1, b2):
    area1 = (b1[:, 2] - b1[:, 0] + 1) * (b1[:, 3] - b1[:, 1] + 1)
    area2 = (b2[:, 2] - b2[:, 0] + 1) * (b2[:, 3] - b2[:, 1] + 1)
    lt = np.maximum(b1[:, None, :2], b2[None, :, :2])
    rb = np.minimum(b1[:, None, 2:], b2[None, :, 2:])
    wh = np.clip(rb - lt + 1, 0, None)
    inter = wh[..., 0] * wh[..., 1]
    return inter / (area1[:, None] + area2[None, :] - inter)


def _ref_single(pred, gt_inds, gt_box, regu_thr, w_low, w_high, expand):
    groups = [np.argwhere(gt_inds == lab).reshape(-1) for lab in np.unique(gt_inds)]
    sel, gts = [], []
    for ind in groups:
        gid = int(gt_inds[ind[0]])
        if gid < 0:
            continue
        sel.append(ind)
        gts.append(gid)
    if not sel:
        return 0.0, 0.0
    gt_order = np.array(gts)

    boxes = gt_box.astype(np.float64).copy()
    h = boxes[:, 3] - boxes[:, 1] + 1
    w = boxes[:, 2] - boxes[:, 0] + 1
    boxes[:, 0] -= w * expand
    boxes[:, 2] += w * expand
    boxes[:, 1] -= h * expand
    boxes[:, 3] += h * expand
    iou = _ref_bbox_overlaps(boxes, boxes)
    push_w = np.where(iou > 0, w_high, w_low)
    item_push_w = push_w[gt_order][:, gt_order]
    pull_w_all = np.where(iou.sum(1) > 0, w_low, w_high)
    item_pull_w = pull_w_all[gt_order]

    pull = 0.0
    tags = []
    for i, ind in enumerate(sel):
        group = pred[ind].astype(np.float64)
        tag = group.mean(0)
        tags.append(tag)
        cur = ((group - tag[None, :]) ** 2).mean(1)
        cur = np.where(cur < regu_thr, 0.0, cur)
        pull += cur.mean() * item_pull_w[i]
    tags = np.stack(tags)
    num = tags.shape[0]
    diff = ((tags[:, None, :] - tags[None, :, :]) ** 2).mean(2)
    push_mat = np.exp(-diff)
    ipw = item_push_w.copy()
    ipw[push_mat < regu_thr] = 0.0
    push = (push_mat * ipw).sum() - num * w_high
    eps = 1e-6
    pull = pull / (num + eps)
    push = push / ((num - 1) * num + eps) * 0.5
    return push, pull


def _ref_loss(pred, gt_inds, gt_bboxes, pull_weight, push_weight,
              regu_thr, w_low, w_high, expand):
    B = pred.shape[0]
    push_loss, pull_loss = 0.0, 0.0
    for b in range(B):
        p, q = _ref_single(pred[b], gt_inds[b], gt_bboxes[b],
                           regu_thr, w_low, w_high, expand)
        push_loss += p
        pull_loss += q
    return push_loss / B * push_weight, pull_loss / B * pull_weight


# ----------------------------------------------------------------------------
if __name__ == "__main__":
    key = jax.random.PRNGKey(0)
    B, N, C, G = 2, 128, 8, 8   # batch, preds-per-image, tag dim, gt boxes

    k1, k2, k3, k4, k5 = jax.random.split(key, 5)
    pred = jax.random.normal(k1, (B, N, C), dtype=jnp.float32)
    gt_inds = jax.random.randint(k2, (B, N), -1, G).astype(jnp.int32)
    x1 = jax.random.uniform(k3, (B, G, 1), minval=0.0, maxval=60.0)
    y1 = jax.random.uniform(k4, (B, G, 1), minval=0.0, maxval=60.0)
    wh = jax.random.uniform(k5, (B, G, 2), minval=4.0, maxval=30.0)
    gt_bboxes = jnp.concatenate(
        [x1, y1, x1 + wh[..., 0:1], y1 + wh[..., 1:2]], axis=-1).astype(jnp.float32)

    # module defaults: pull_weight=1, push_weight=1, regu_thr=1e-3,
    #                  w_low=0.1, w_high=10, expand=0.25
    out = simple_tag_offset_regu_loss_pallas(
        pred, gt_inds, gt_bboxes,
        pull_weight=1.0, push_weight=1.0, regu_thr=1e-3,
        w_low=0.1, w_high=10.0, expand=0.25)

    push = float(jax.block_until_ready(out['push_loss']))
    pull = float(jax.block_until_ready(out['pull_loss']))

    # reference computed on the same bf16-quantized pred the kernel consumes
    pred_q = np.asarray(pred.astype(jnp.bfloat16).astype(jnp.float32))
    ref_push, ref_pull = _ref_loss(
        pred_q, np.asarray(gt_inds), np.asarray(gt_bboxes),
        pull_weight=1.0, push_weight=1.0, regu_thr=1e-3,
        w_low=0.1, w_high=10.0, expand=0.25)

    np.testing.assert_allclose(push, ref_push, rtol=5e-3, atol=5e-3)
    np.testing.assert_allclose(pull, ref_pull, rtol=5e-3, atol=5e-3)

    print("KERNEL_OK")
</pallas_src>

<mosaic_0001>
module attributes {stable_mosaic.version = 11 : i64} {
  func.func @_tag_loss_kernel(%arg0: i32, %arg1: memref<1x8x128xbf16, #tpu.memory_space<vmem>>, %arg2: memref<1x1x128xi32, #tpu.memory_space<vmem>>, %arg3: memref<1x8x9xf32, #tpu.memory_space<vmem>>, %arg4: memref<1x8x128xf32, #tpu.memory_space<vmem>>) attributes {dimension_semantics = [#tpu.dimension_semantics<parallel>], iteration_bounds = array<i64: 2>, scalar_prefetch = 0 : i64, scratch_operands = 0 : i64, tpu.core_type = #tpu.core_type<tc>, window_params = [{transform_indices = @transform_0, window_bounds = array<i64: 1, 8, 128>}, {transform_indices = @transform_1, window_bounds = array<i64: 1, 1, 128>}, {transform_indices = @transform_2, window_bounds = array<i64: 1, 8, 9>}, {transform_indices = @transform_3, window_bounds = array<i64: 1, 8, 128>}]} {
    %c0 = arith.constant 0 : index
    %c0_0 = arith.constant 0 : index
    %c0_1 = arith.constant 0 : index
    %0 = vector.load %arg2[%c0, %c0_0, %c0_1] : memref<1x1x128xi32, #tpu.memory_space<vmem>>, vector<1x1x128xi32>
    %1 = tpu.iota {dimensions = array<i32: 1>} : vector<1x8x128xi32>
    %2 = vector.broadcast %0 : vector<1x1x128xi32> to vector<1x8x128xi32>
    %3 = arith.cmpi eq, %1, %2 : vector<1x8x128xi32>
    %4 = arith.extui %3 : vector<1x8x128xi1> to vector<1x8x128xi32>
    %5 = arith.sitofp %4 : vector<1x8x128xi32> to vector<1x8x128xf32>
    %cst = arith.constant dense<0.000000e+00> : vector<1x8xf32>
    %6 = vector.multi_reduction <add>, %5, %cst [2] : vector<1x8x128xf32> to vector<1x8xf32>
    %7 = vector.shape_cast %6 : vector<1x8xf32> to vector<1x8x1xf32>
    %cst_2 = arith.constant 5.000000e-01 : f32
    %8 = vector.broadcast %cst_2 : f32 to vector<1x8x1xf32>
    %9 = arith.cmpf ogt, %7, %8 : vector<1x8x1xf32>
    %10 = arith.extui %9 : vector<1x8x1xi1> to vector<1x8x1xi32>
    %11 = arith.sitofp %10 : vector<1x8x1xi32> to vector<1x8x1xf32>
    %cst_3 = arith.constant 1.000000e+00 : f32
    %12 = vector.broadcast %cst_3 : f32 to vector<1x8x1xf32>
    %13 = arith.maximumf %7, %12 : vector<1x8x1xf32>
    %14 = arith.divf %11, %13 : vector<1x8x1xf32>
    %cst_4 = arith.constant dense<0.000000e+00> : vector<1x1xf32>
    %15 = vector.multi_reduction <add>, %11, %cst_4 [1] : vector<1x8x1xf32> to vector<1x1xf32>
    %16 = vector.shape_cast %15 : vector<1x1xf32> to vector<1x1x1xf32>
    %c0_5 = arith.constant 0 : index
    %c0_6 = arith.constant 0 : index
    %c0_7 = arith.constant 0 : index
    %17 = vector.load %arg1[%c0_5, %c0_6, %c0_7] : memref<1x8x128xbf16, #tpu.memory_space<vmem>>, vector<1x8x128xbf16>
    %18 = arith.extf %17 : vector<1x8x128xbf16> to vector<1x8x128xf32>
    %19 = vector.shape_cast %5 : vector<1x8x128xf32> to vector<8x128xf32>
    %20 = vector.shape_cast %18 : vector<1x8x128xf32> to vector<8x128xf32>
    %cst_8 = arith.constant dense<0.000000e+00> : vector<8x8xf32>
    %21 = tpu.matmul %19, %20, %cst_8 {dimension_numbers = #tpu.dot_dimension_numbers<[1], [1], [0], [0], [0, 0, 1, 0], [], []>} : vector<8x128xf32>, vector<8x128xf32>, vector<8x8xf32> -> vector<8x8xf32>
    %22 = vector.shape_cast %14 : vector<1x8x1xf32> to vector<8x1xf32>
    %23 = vector.broadcast %22 : vector<8x1xf32> to vector<8x8xf32>
    %24 = arith.mulf %21, %23 : vector<8x8xf32>
    %cst_9 = arith.constant dense<0.000000e+00> : vector<8x8xf32>
    %25 = tpu.matmul %24, %24, %cst_9 {dimension_numbers = #tpu.dot_dimension_numbers<[1], [1], [0], [0], [0, 0, 1, 0], [], []>} : vector<8x8xf32>, vector<8x8xf32>, vector<8x8xf32> -> vector<8x8xf32>
    %26 = arith.mulf %24, %24 : vector<8x8xf32>
    %cst_10 = arith.constant dense<0.000000e+00> : vector<8xf32>
    %27 = vector.multi_reduction <add>, %26, %cst_10 [1] : vector<8x8xf32> to vector<8xf32>
    %28 = vector.shape_cast %27 : vector<8xf32> to vector<8x1xf32>
    %29 = tpu.iota {dimensions = array<i32: 0>} : vector<8x8xi32>
    %30 = tpu.iota {dimensions = array<i32: 1>} : vector<8x8xi32>
    %31 = arith.cmpi eq, %29, %30 : vector<8x8xi32>
    %32 = arith.extui %31 : vector<8x8xi1> to vector<8x8xi32>
    %33 = arith.sitofp %32 : vector<8x8xi32> to vector<8x8xf32>
    %34 = arith.mulf %25, %33 : vector<8x8xf32>
    %cst_11 = arith.constant dense<0.000000e+00> : vector<8xf32>
    %35 = vector.multi_reduction <add>, %34, %cst_11 [0] : vector<8x8xf32> to vector<8xf32>
    %36 = vector.shape_cast %35 : vector<8xf32> to vector<1x8xf32>
    %37 = tpu.iota {dimensions = array<i32: 0>} : vector<8x8xi32>
    %38 = tpu.iota {dimensions = array<i32: 1>} : vector<8x8xi32>
    %39 = arith.cmpi ne, %37, %38 : vector<8x8xi32>
    %40 = arith.extui %39 : vector<8x8xi1> to vector<8x8xi32>
    %41 = arith.sitofp %40 : vector<8x8xi32> to vector<8x8xf32>
    %cst_12 = arith.constant 1.000000e+00 : f32
    %42 = vector.broadcast %cst_12 : f32 to vector<1x8xf32>
    %cst_13 = arith.constant 0.000000e+00 : f32
    %43 = vector.broadcast %cst_13 : f32 to vector<1x1xf32>
    %cst_14 = arith.constant 0.000000e+00 : f32
    %44 = vector.broadcast %cst_14 : f32 to vector<1x1xf32>
    %45 = vector.shape_cast %5 : vector<1x8x128xf32> to vector<8x128xf32>
    %46 = vector.shape_cast %14 : vector<1x8x1xf32> to vector<8x1xf32>
    %47 = vector.shape_cast %11 : vector<1x8x1xf32> to vector<8x1xf32>
    %48 = vector.shape_cast %16 : vector<1x1x1xf32> to vector<1x1xf32>
    %c0_15 = arith.constant 0 : index
    %c0_16 = arith.constant 0 : index
    %c0_17 = arith.constant 0 : index
    %49 = vector.load %arg3[%c0_15, %c0_16, %c0_17] : memref<1x8x9xf32, #tpu.memory_space<vmem>>, vector<1x8x9xf32>
    %50 = vector.shape_cast %49 : vector<1x8x9xf32> to vector<8x9xf32>
    %51 = vector.extract_strided_slice %50 {offsets = [0, 0], sizes = [8, 8], strides = [1, 1]} : vector<8x9xf32> to vector<8x8xf32>
    %52 = vector.extract_strided_slice %50 {offsets = [0, 8], sizes = [8, 1], strides = [1, 1]} : vector<8x9xf32> to vector<8x1xf32>
    %cst_18 = arith.constant dense<0.000000e+00> : vector<8x128xf32>
    %53 = tpu.matmul %24, %45, %cst_18 {dimension_numbers = #tpu.dot_dimension_numbers<[0], [0], [1], [1], [0, 1, 1, 1], [], []>} : vector<8x8xf32>, vector<8x128xf32>, vector<8x128xf32> -> vector<8x128xf32>
    %54 = vector.shape_cast %18 : vector<1x8x128xf32> to vector<8x128xf32>
    %55 = arith.subf %54, %53 : vector<8x128xf32>
    %56 = arith.mulf %55, %55 : vector<8x128xf32>
    %cst_19 = arith.constant dense<0.000000e+00> : vector<128xf32>
    %57 = vector.multi_reduction <add>, %56, %cst_19 [0] : vector<8x128xf32> to vector<128xf32>
    %58 = vector.shape_cast %57 : vector<128xf32> to vector<1x128xf32>
    %cst_20 = arith.constant 1.250000e-01 : f32
    %59 = vector.broadcast %cst_20 : f32 to vector<1x128xf32>
    %60 = arith.mulf %58, %59 : vector<1x128xf32>
    %cst_21 = arith.constant 1.000000e-03 : f32
    %61 = vector.broadcast %cst_21 : f32 to vector<1x128xf32>
    %62 = arith.cmpf olt, %60, %61 : vector<1x128xf32>
    %cst_22 = arith.constant 0.000000e+00 : f32
    %63 = vector.broadcast %cst_22 : f32 to vector<1x128xf32>
    %64 = arith.select %62, %63, %60 : vector<1x128xi1>, vector<1x128xf32>
    %65 = arith.mulf %52, %46 : vector<8x1xf32>
    %66 = vector.broadcast %65 : vector<8x1xf32> to vector<8x128xf32>
    %67 = arith.mulf %45, %66 : vector<8x128xf32>
    %cst_23 = arith.constant dense<0.000000e+00> : vector<128xf32>
    %68 = vector.multi_reduction <add>, %67, %cst_23 [0] : vector<8x128xf32> to vector<128xf32>
    %69 = vector.shape_cast %68 : vector<128xf32> to vector<1x128xf32>
    %70 = arith.mulf %64, %69 : vector<1x128xf32>
    %71 = vector.shape_cast %70 : vector<1x128xf32> to vector<1x1x128xf32>
    %cst_24 = arith.constant dense<0.000000e+00> : vector<1xf32>
    %72 = vector.multi_reduction <add>, %71, %cst_24 [1, 2] : vector<1x1x128xf32> to vector<1xf32>
    %73 = vector.shape_cast %72 : vector<1xf32> to vector<1x1x1xf32>
    %74 = vector.extract %73[0, 0, 0] : f32 from vector<1x1x1xf32>
    %75 = vector.broadcast %74 : f32 to vector<1x1xf32>
    %76 = vector.broadcast %28 : vector<8x1xf32> to vector<8x8xf32>
    %77 = vector.broadcast %36 : vector<1x8xf32> to vector<8x8xf32>
    %78 = arith.addf %76, %77 : vector<8x8xf32>
    %cst_25 = arith.constant 2.000000e+00 : f32
    %79 = vector.broadcast %cst_25 : f32 to vector<8x8xf32>
    %80 = arith.mulf %79, %25 : vector<8x8xf32>
    %81 = arith.subf %78, %80 : vector<8x8xf32>
    %cst_26 = arith.constant 0.000000e+00 : f32
    %82 = vector.broadcast %cst_26 : f32 to vector<8x8xf32>
    %83 = arith.maximumf %81, %82 : vector<8x8xf32>
    %cst_27 = arith.constant 1.250000e-01 : f32
    %84 = vector.broadcast %cst_27 : f32 to vector<8x8xf32>
    %85 = arith.mulf %83, %84 : vector<8x8xf32>
    %86 = arith.mulf %85, %41 : vector<8x8xf32>
    %cst_28 = arith.constant 0.000000e+00 : f32
    %87 = vector.broadcast %cst_28 : f32 to vector<8x8xf32>
    %88 = arith.subf %87, %86 : vector<8x8xf32>
    %89 = math.exp %88 : vector<8x8xf32>
    %cst_29 = arith.constant 1.000000e-03 : f32
    %90 = vector.broadcast %cst_29 : f32 to vector<8x8xf32>
    %91 = arith.cmpf olt, %89, %90 : vector<8x8xf32>
    %cst_30 = arith.constant 0.000000e+00 : f32
    %92 = vector.broadcast %cst_30 : f32 to vector<8x8xf32>
    %93 = arith.select %91, %92, %51 : vector<8x8xi1>, vector<8x8xf32>
    %94 = arith.mulf %89, %93 : vector<8x8xf32>
    %95 = vector.broadcast %47 : vector<8x1xf32> to vector<8x8xf32>
    %96 = vector.broadcast %42 : vector<1x8xf32> to vector<8x8xf32>
    %97 = arith.mulf %95, %96 : vector<8x8xf32>
    %cst_31 = arith.constant dense<0.000000e+00> : vector<8x8xf32>
    %98 = tpu.matmul %94, %97, %cst_31 {dimension_numbers = #tpu.dot_dimension_numbers<[1], [0], [0], [1], [0, 0, 1, 1], [], []>} : vector<8x8xf32>, vector<8x8xf32>, vector<8x8xf32> -> vector<8x8xf32>
    %99 = vector.extract_strided_slice %98 {offsets = [0, 0], sizes = [8, 1], strides = [1, 1]} : vector<8x8xf32> to vector<8x1xf32>
    %100 = arith.mulf %99, %47 : vector<8x1xf32>
    %101 = vector.shape_cast %100 : vector<8x1xf32> to vector<1x8x1xf32>
    %cst_32 = arith.constant dense<0.000000e+00> : vector<1xf32>
    %102 = vector.multi_reduction <add>, %101, %cst_32 [1, 2] : vector<1x8x1xf32> to vector<1xf32>
    %103 = vector.shape_cast %102 : vector<1xf32> to vector<1x1x1xf32>
    %104 = vector.extract %103[0, 0, 0] : f32 from vector<1x1x1xf32>
    %105 = vector.broadcast %104 : f32 to vector<1x1xf32>
    %cst_33 = arith.constant 1.000000e+01 : f32
    %106 = vector.broadcast %cst_33 : f32 to vector<1x1xf32>
    %107 = arith.mulf %48, %106 : vector<1x1xf32>
    %108 = arith.subf %105, %107 : vector<1x1xf32>
    %cst_34 = arith.constant 9.99999997E-7 : f32
    %109 = vector.broadcast %cst_34 : f32 to vector<1x1xf32>
    %110 = arith.addf %48, %109 : vector<1x1xf32>
    %111 = arith.divf %75, %110 : vector<1x1xf32>
    %112 = arith.addf %44, %111 : vector<1x1xf32>
    %cst_35 = arith.constant 1.000000e+00 : f32
    %113 = vector.broadcast %cst_35 : f32 to vector<1x1xf32>
    %114 = arith.subf %48, %113 : vector<1x1xf32>
    %115 = arith.mulf %114, %48 : vector<1x1xf32>
    %cst_36 = arith.constant 9.99999997E-7 : f32
    %116 = vector.broadcast %cst_36 : f32 to vector<1x1xf32>
    %117 = arith.addf %115, %116 : vector<1x1xf32>
    %118 = arith.divf %108, %117 : vector<1x1xf32>
    %cst_37 = arith.constant 5.000000e-01 : f32
    %119 = vector.broadcast %cst_37 : f32 to vector<1x1xf32>
    %120 = arith.mulf %118, %119 : vector<1x1xf32>
    %121 = arith.addf %43, %120 : vector<1x1xf32>
    %122 = tpu.iota {dimensions = array<i32: 0>} : vector<8x128xi32>
    %c0_i32 = arith.constant 0 : i32
    %123 = vector.broadcast %c0_i32 : i32 to vector<8x128xi32>
    %124 = arith.cmpi eq, %122, %123 : vector<8x128xi32>
    %c1_i32 = arith.constant 1 : i32
    %125 = vector.broadcast %c1_i32 : i32 to vector<8x128xi32>
    %126 = arith.cmpi eq, %122, %125 : vector<8x128xi32>
    %cst_38 = arith.constant 0.000000e+00 : f32
    %127 = vector.shape_cast %112 : vector<1x1xf32> to vector<1x1xf32>
    %128 = vector.broadcast %127 : vector<1x1xf32> to vector<8x128xf32>
    %129 = vector.broadcast %cst_38 : f32 to vector<8x128xf32>
    %130 = arith.select %126, %128, %129 : vector<8x128xi1>, vector<8x128xf32>
    %131 = vector.shape_cast %121 : vector<1x1xf32> to vector<1x1xf32>
    %132 = vector.broadcast %131 : vector<1x1xf32> to vector<8x128xf32>
    %133 = arith.select %124, %132, %130 : vector<8x128xi1>, vector<8x128xf32>
    %c0_39 = arith.constant 0 : index
    %c0_40 = arith.constant 0 : index
    %c0_41 = arith.constant 0 : index
    %134 = vector.load %arg4[%c0_39, %c0_40, %c0_41] : memref<1x8x128xf32, #tpu.memory_space<vmem>>, vector<1x8x128xf32>
    %135 = vector.shape_cast %134 : vector<1x8x128xf32> to vector<8x128xf32>
    %136 = vector.shape_cast %133 : vector<8x128xf32> to vector<1x8x128xf32>
    tpu.vector_store %arg4[%c0_39, %c0_40, %c0_41], %136 {strides = array<i32>} : memref<1x8x128xf32, #tpu.memory_space<vmem>>, vector<1x8x128xf32>,
    return
  }
  func.func @transform_0(%arg0: i32) -> (i32, i32, i32) {
    %c0_i32 = arith.constant 0 : i32
    %c0_i32_0 = arith.constant 0 : i32
    %c0_i32_1 = arith.constant 0 : i32
    return %arg0, %c0_i32, %c0_i32_0 : i32, i32, i32
  }
  func.func @transform_1(%arg0: i32) -> (i32, i32, i32) {
    %c0_i32 = arith.constant 0 : i32
    %c0_i32_0 = arith.constant 0 : i32
    %c0_i32_1 = arith.constant 0 : i32
    return %arg0, %c0_i32, %c0_i32_0 : i32, i32, i32
  }
  func.func @transform_2(%arg0: i32) -> (i32, i32, i32) {
    %c0_i32 = arith.constant 0 : i32
    %c0_i32_0 = arith.constant 0 : i32
    %c0_i32_1 = arith.constant 0 : i32
    return %arg0, %c0_i32, %c0_i32_0 : i32, i32, i32
  }
  func.func @transform_3(%arg0: i32) -> (i32, i32, i32) {
    %c0_i32 = arith.constant 0 : i32
    %c0_i32_0 = arith.constant 0 : i32
    %c0_i32_1 = arith.constant 0 : i32
    return %arg0, %c0_i32, %c0_i32_0 : i32, i32, i32
  }
}

</mosaic_0001>

<llo_original>
// kernel: tpu_custom_call.1
$region0: #{tpu_custom_call.1}
  #allocation0 [shape = 'u32[]', space=smem, size = 0x4, offset = 0x4, fixed_abs, tag = 'smem constant byte address 0x4 - core index']
  #allocation1 [shape = 'u32[144,128]{1,0:T(1,128)}', space=vmem, size = 0x12000, scoped, tag = 'internal scratch']
  %s0 = inlined_call_operand.hbm [shape: bf16[2,8,128], index: 0, kind: input, shape index: {}]
  %s1 = inlined_call_operand.vmem [shape: s32[2,1,128], index: 1, kind: input, shape index: {}]
  %s2 = inlined_call_operand.hbm [shape: f32[2,8,9], index: 2, kind: input, shape index: {}]
  %s3 = inlined_call_operand.hbm [shape: f32[2,8,128], index: 3, kind: output, shape index: {}]
  %s4 = sld [smem:[#allocation0]]
  $region53: #{tpu_custom_call.1} parent=0
    _
  %s6 = ssub.s32 1, %s4
  %s7 = scalar_select 0, %s6, %s4
  $region1: #{tpu_custom_call.1} parent=0
    #allocation2 [shape = 'u8[4096]{0}', space=vmem, size = 0x1000, scoped, tag = 'input window, operand 0']
    #allocation3 [shape = 's32[2]{0}', space=sflag, size = 0x8, scoped, tag = 'scoped memory for tpu_custom_call.1']
    #allocation4 [shape = 's32[2]{0}', space=sflag, size = 0x8, scoped, tag = 'scoped memory for tpu_custom_call.1']
    #allocation5 [shape = 'u8[8192]{0}', space=vmem, size = 0x2000, scoped, tag = 'input window, operand 2']
    #allocation6 [shape = 's32[2]{0}', space=sflag, size = 0x8, scoped, tag = 'scoped memory for tpu_custom_call.1']
    #allocation7 [shape = 'u8[8192]{0}', space=vmem, size = 0x2000, scoped, tag = 'output window, operand 0']
    %8 = vsyncpa [#allocation3], 0
    %s9 = scalar_lea.sflag [#allocation3], 1
    %10 = vsyncpa %s9, 0
    %11 = vsyncpa [#allocation6], 0
    %s12 = scalar_lea.sflag [#allocation6], 1
    %13 = vsyncpa %s12, 0
    %14 = vsyncpa [#allocation4], 0
    %s15 = scalar_lea.sflag [#allocation4], 1
    %16 = vsyncpa %s15, 0
    loop: start=0, step=1, limit=4
    $region2: #{tpu_custom_call.1} parent=1 // loop_pre_header
      _
    $region3: #{tpu_custom_call.1} parent=1 // loop_header
      %s18 = sphi 0, %s22
      %p19 = scmp.ge.s32.totalorder %s18, 4
      %s28 = sphi 0, %s30
      %s31 = sphi 0, %s28
      %s32 = sphi 0, %s31
      %s48 = sphi 0, %s32
      %s54 = sphi 0, %s56
      %s57 = sphi 0, %s54
      %s58 = sphi 0, %s57
      %s74 = sphi 0, %s58
      %s80 = sphi 0, %s82
      %s83 = sphi 0, %s80
      %s84 = sphi 0, %s83
      %s100 = sphi 0, %s84
      %s106 = sphi 0, %s108
      %s109 = sphi 0, %s106
      %s110 = sphi 0, %s109
      %s126 = sphi 0, %s110
    $region4: #{tpu_custom_call.1} parent=1 // loop_header_branch
      %21 = sbr.rel (%p19) target = $region8
    $region5: #{tpu_custom_call.1} parent=1 // loop_body
      %s23 = ssub.s32 %s18, 1
      %s24 = ssub.s32 %s18, 2
      %s25 = sadd.s32 %s18, 1
      %s26 = ssub.s32 %s18, %s25
      %p27 = scmp.eq.s32.totalorder %s26, 0
      %s29 = sadd.s32 %s28, 1
      %s30 = scalar_select %p27, %s28, %s29
      %p33 = pneg %p27
      %p34 = scmp.eq.s32.totalorder %s18, 1
      %p35 = por %p33, %p34
      %p36 = scmp.ne.s32.totalorder %s28, %s31
      %p37 = scmp.eq.s32.totalorder %s18, 0
      %p38 = por %p36, %p37
      %p39 = scmp.ne.s32.totalorder %s28, %s31
      %p40 = scmp.eq.s32.totalorder %s23, 1
      %p41 = por %p39, %p40
      %p42 = scmp.ne.s32.totalorder %s31, %s32
      %p43 = scmp.eq.s32.totalorder %s23, 0
      %p44 = por %p42, %p43
      %p45 = scmp.ne.s32.totalorder %s31, %s32
      %p46 = scmp.eq.s32.totalorder %s24, 1
      %p47 = por %p45, %p46
      %p49 = scmp.ne.s32.totalorder %s32, %s48
      %p50 = scmp.eq.s32.totalorder %s24, 0
      %p51 = por %p49, %p50
      %s52 = ssub.s32 %s18, %s25
      %p53 = scmp.eq.s32.totalorder %s52, 0
      %s55 = sadd.s32 %s54, 1
      %s56 = scalar_select %p53, %s54, %s55
      %p59 = pneg %p53
      %p60 = scmp.eq.s32.totalorder %s18, 1
      %p61 = por %p59, %p60
      %p62 = scmp.ne.s32.totalorder %s54, %s57
      %p63 = scmp.eq.s32.totalorder %s18, 0
      %p64 = por %p62, %p63
      %p65 = scmp.ne.s32.totalorder %s54, %s57
      %p66 = scmp.eq.s32.totalorder %s23, 1
      %p67 = por %p65, %p66
      %p68 = scmp.ne.s32.totalorder %s57, %s58
      %p69 = scmp.eq.s32.totalorder %s23, 0
      %p70 = por %p68, %p69
      %p71 = scmp.ne.s32.totalorder %s57, %s58
      %p72 = scmp.eq.s32.totalorder %s24, 1
      %p73 = por %p71, %p72
      %p75 = scmp.ne.s32.totalorder %s58, %s74
      %p76 = scmp.eq.s32.totalorder %s24, 0
      %p77 = por %p75, %p76
      %s78 = ssub.s32 %s18, %s25
      %p79 = scmp.eq.s32.totalorder %s78, 0
      %s81 = sadd.s32 %s80, 1
      %s82 = scalar_select %p79, %s80, %s81
      %p85 = pneg %p79
      %p86 = scmp.eq.s32.totalorder %s18, 1
      %p87 = por %p85, %p86
      %p88 = scmp.ne.s32.totalorder %s80, %s83
      %p89 = scmp.eq.s32.totalorder %s18, 0
      %p90 = por %p88, %p89
      %p91 = scmp.ne.s32.totalorder %s80, %s83
      %p92 = scmp.eq.s32.totalorder %s23, 1
      %p93 = por %p91, %p92
      %p94 = scmp.ne.s32.totalorder %s83, %s84
      %p95 = scmp.eq.s32.totalorder %s23, 0
      %p96 = por %p94, %p95
      %p97 = scmp.ne.s32.totalorder %s83, %s84
      %p98 = scmp.eq.s32.totalorder %s24, 1
      %p99 = por %p97, %p98
      %p101 = scmp.ne.s32.totalorder %s84, %s100
      %p102 = scmp.eq.s32.totalorder %s24, 0
      %p103 = por %p101, %p102
      %s104 = ssub.s32 %s18, %s25
      %p105 = scmp.eq.s32.totalorder %s104, 0
      %s107 = sadd.s32 %s106, 1
      %s108 = scalar_select %p105, %s106, %s107
      %p111 = pneg %p105
      %p112 = scmp.eq.s32.totalorder %s18, 1
      %p113 = por %p111, %p112
      %p114 = scmp.ne.s32.totalorder %s106, %s109
      %p115 = scmp.eq.s32.totalorder %s18, 0
      %p116 = por %p114, %p115
      %p117 = scmp.ne.s32.totalorder %s106, %s109
      %p118 = scmp.eq.s32.totalorder %s23, 1
      %p119 = por %p117, %p118
      %p120 = scmp.ne.s32.totalorder %s109, %s110
      %p121 = scmp.eq.s32.totalorder %s23, 0
      %p122 = por %p120, %p121
      %p123 = scmp.ne.s32.totalorder %s109, %s110
      %p124 = scmp.eq.s32.totalorder %s24, 1
      %p125 = por %p123, %p124
      %p127 = scmp.ne.s32.totalorder %s110, %s126
      %p128 = scmp.eq.s32.totalorder %s24, 0
      %p129 = por %p127, %p128
      %p130 = scmp.le.s32.totalorder 1, %s18
      %p131 = scmp.lt.s32.totalorder %s18, 3
      %p132 = pnand %p130, %p131
      %p133 = pneg %p132
      // Predicated region
      $region9: #{tpu_custom_call.1} parent=5 // pred_check
        _
      $region10: #{tpu_custom_call.1} parent=5 // pred_check_branch
        %135 = sbr.rel (%p132) target = $region12
      $region11: #{tpu_custom_call.1} parent=5 // pred_region
        %s136 = ssub.s32 %s18, 1
      $region12: #{tpu_custom_call.1} parent=5 // pred_fallthru
        _
      %p137 = scmp.lt.s32.totalorder %s18, 2
      // Predicated region
      $region13: #{tpu_custom_call.1} parent=5 // pred_check
        %p138 = pneg %p137
      $region14: #{tpu_custom_call.1} parent=5 // pred_check_branch
        %140 = sbr.rel (%p138) target = $region16
      $region15: #{tpu_custom_call.1} parent=5 // pred_region
        // Predicated region
        $region17: #{tpu_custom_call.1} parent=15 // pred_check
          %p141 = pneg %p38
        $region18: #{tpu_custom_call.1} parent=15 // pred_check_branch
          %143 = sbr.rel (%p141) target = $region20
        $region19: #{tpu_custom_call.1} parent=15 // pred_region
          %s144 = sand.u32 %s28, 1
          %s145 = scalar_lea.sflag [#allocation3], %s144
          %s146 = sand.u32 %s28, 1
          %s147 = smul.addr %s146, 4
          %s148 = scalar_lea.vmem [#allocation2], %s147
          %s150 = ssub.s32 64, 64
          %151 = vsyncadd %s145, %s150
          %s152 = smul.addr %s18, 64
          %s153 = scalar_lea.hbm %s0, %s152
          %s155 = sshll.u32 %s148, 4
          %s156 = int_to_ptr.vmem [resolvable:$true] %s155
          %158 = dma.hbm_to_vmem [thread:$0]  %s153, 64, %s156, %s145
        $region20: #{tpu_custom_call.1} parent=15 // pred_fallthru
          _
        // Predicated region
        $region21: #{tpu_custom_call.1} parent=15 // pred_check
          %p159 = pneg %p64
        $region22: #{tpu_custom_call.1} parent=15 // pred_check_branch
          %161 = sbr.rel (%p159) target = $region24
        $region23: #{tpu_custom_call.1} parent=15 // pred_region
          %p162 = scmp.lt.s32.totalorder %s18, 1
          %s163 = scalar_select %p162, %s18, 1
          %s164 = scalar_lea.vmem %s1, %s163
        $region24: #{tpu_custom_call.1} parent=15 // pred_fallthru
          _
        // Predicated region
        $region25: #{tpu_custom_call.1} parent=15 // pred_check
          %p165 = pneg %p90
        $region26: #{tpu_custom_call.1} parent=15 // pred_check_branch
          %167 = sbr.rel (%p165) target = $region28
        $region27: #{tpu_custom_call.1} parent=15 // pred_region
          %s168 = sand.u32 %s80, 1
          %s169 = scalar_lea.sflag [#allocation6], %s168
          %s170 = sand.u32 %s80, 1
          %s171 = smul.addr %s170, 8
          %s172 = scalar_lea.vmem [#allocation5], %s171
          %s174 = ssub.s32 128, 128
          %175 = vsyncadd %s169, %s174
          %s176 = smul.addr %s18, 128
          %s177 = scalar_lea.hbm %s2, %s176
          %s179 = sshll.u32 %s172, 4
          %s180 = int_to_ptr.vmem [resolvable:$true] %s179
          %182 = dma.hbm_to_vmem [thread:$0]  %s177, 128, %s180, %s169
        $region28: #{tpu_custom_call.1} parent=15 // pred_fallthru
          _
      $region16: #{tpu_custom_call.1} parent=5 // pred_fallthru
        _
      %p183 = scmp.le.s32.totalorder 1, %s18
      %p184 = scmp.lt.s32.totalorder %s18, 3
      %p185 = pnand %p183, %p184
      %p186 = pneg %p185
      // Predicated region
      $region29: #{tpu_custom_call.1} parent=5 // pred_check
        _
      $region30: #{tpu_custom_call.1} parent=5 // pred_check_branch
        %188 = sbr.rel (%p185) target = $region32
      $region31: #{tpu_custom_call.1} parent=5 // pred_region
        %s189 = ssub.s32 %s18, 1
        %s190 = sand.u32 %s31, 1
        %s191 = scalar_lea.sflag [#allocation3], %s190
        %s192 = sand.u32 %s31, 1
        %s193 = smul.addr %s192, 4
        %s194 = scalar_lea.vmem [#allocation2], %s193
        // Predicated region
        $region33: #{tpu_custom_call.1} parent=31 // pred_check
          %p195 = pneg %p44
        $region34: #{tpu_custom_call.1} parent=31 // pred_check_branch
          %197 = sbr.rel (%p195) target = $region36
        $region35: #{tpu_custom_call.1} parent=31 // pred_region
          %198 = dma.done %s191, 64
        $region36: #{tpu_custom_call.1} parent=31 // pred_fallthru
          _
        %s199 = sand.u32 %s83, 1
        %s200 = scalar_lea.sflag [#allocation6], %s199
        %s201 = sand.u32 %s83, 1
        %s202 = smul.addr %s201, 8
        %s203 = scalar_lea.vmem [#allocation5], %s202
        // Predicated region
        $region37: #{tpu_custom_call.1} parent=31 // pred_check
          %p204 = pneg %p96
        $region38: #{tpu_custom_call.1} parent=31 // pred_check_branch
          %206 = sbr.rel (%p204) target = $region40
        $region39: #{tpu_custom_call.1} parent=31 // pred_region
          %207 = dma.done %s200, 128
        $region40: #{tpu_custom_call.1} parent=31 // pred_fallthru
          _
        %s208 = sand.u32 %s31, 1
        %s209 = scalar_lea.sflag [#allocation3], %s208
        %s210 = sand.u32 %s31, 1
        %s211 = smul.addr %s210, 4
        %s212 = scalar_lea.vmem [#allocation2], %s211
        %p213 = pneg %p44
        %p214 = pneg %p41
        %p215 = scmp.lt.s32.totalorder %s23, 1
        %s216 = scalar_select %p215, %s23, 1
        %s217 = scalar_lea.vmem %s1, %s216
        %p218 = pneg %p70
        %p219 = pneg %p67
        %s220 = sand.u32 %s83, 1
        %s221 = scalar_lea.sflag [#allocation6], %s220
        %s222 = sand.u32 %s83, 1
        %s223 = smul.addr %s222, 8
        %s224 = scalar_lea.vmem [#allocation5], %s223
        %p225 = pneg %p96
        %p226 = pneg %p93
        %p227 = pneg %p122
        %p228 = pneg %p119
        %s229 = sand.u32 %s109, 1
        %s230 = scalar_lea.sflag [#allocation4], %s229
        %s231 = sand.u32 %s109, 1
        %s232 = smul.addr %s231, 8
        %s233 = scalar_lea.vmem [#allocation7], %s232
        %p234 = scmp.lt.s32.totalorder %s23, 1
        %s235 = scalar_select %p234, %s23, 1
        %s236 = scalar_lea.vmem %s1, %s235
        %v237 = vld [vmem:[%s236] sm:$0x1]
        %v238 = vlaneseq
        %v239 = vshrl.u32 %v238, 7
        %v240 = vlaneseq
        %v241 = vshrl.u32 %v240, 7
        %v242 = vsub.s32 0, %v241
        %v243 = vrot.slane %v237, %v242
        %vm244 = vcmp.eq.s32.totalorder %v239, %v243
        %v245 = vsel %vm244, 1, 0
        %v246 = vcvt.s32.f32 %v245
        %247 = vadd.xlane.f32.xlu0 %v246
        %v248 = vpop.xlane.xlu0 %247
        %vm249 = vcmp.gt.f32.partialorder %v248, 0.5
        %v250 = vsel %vm249, 1, 0
        %v251 = vcvt.s32.f32 %v250
        %v252 = vmax.f32 %v248, 1.0
        %v253 = vrcp.pop %v252
        %v254 = vmul.f32 %v251, %v253
        %v255 = vrot.slane %v251, 4
        %v256 = vadd.f32 %v251, %v255
        %v257 = vrot.slane %v256, 2
        %v258 = vadd.f32 %v256, %v257
        %v259 = vrot.slane %v258, 1
        %v260 = vadd.f32 %v258, %v259
        %v261 = vld [vmem:[%s194] sm:$0xf]
        %v262 = vunpack.c.l.bf16 %v261
        %263 = vmatprep.subr.mxu0 0.0
        %264 = vmatpush1.xpose.msra.mxu0 %v262
        %265 = vmatprep.subr.mxu0 0.0
        %266 = vmatpush1.xpose.msra.mxu0 0.0
        %267 = vmatprep.subr.mxu0 0.0
        %268 = vmatpush1.xpose.msra.mxu0 0.0
        %269 = vmatprep.subr.mxu0 0.0
        %270 = vmatpush1.xpose.msra.mxu0 0.0
        %271 = vmatprep.subr.mxu0 0.0
        %272 = vmatpush1.xpose.msra.mxu0 0.0
        %273 = vmatprep.subr.mxu0 0.0
        %274 = vmatpush1.xpose.msra.mxu0 0.0
        %275 = vmatprep.subr.mxu0 0.0
        %276 = vmatpush1.xpose.msra.mxu0 0.0
        %277 = vmatprep.subr.mxu0 0.0
        %278 = vmatpush1.xpose.msra.mxu0 0.0
        %279 = vmatprep.subr.mxu0 0.0
        %280 = vmatpush1.xpose.msra.mxu0 0.0
        %281 = vmatprep.subr.mxu0 0.0
        %282 = vmatpush1.xpose.msra.mxu0 0.0
        %283 = vmatprep.subr.mxu0 0.0
        %284 = vmatpush1.xpose.msra.mxu0 0.0
        %285 = vmatprep.subr.mxu0 0.0
        %286 = vmatpush1.xpose.msra.mxu0 0.0
        %287 = vmatprep.subr.mxu0 0.0
        %288 = vmatpush1.xpose.msra.mxu0 0.0
        %289 = vmatprep.subr.mxu0 0.0
        %290 = vmatpush1.xpose.msra.mxu0 0.0
        %291 = vmatprep.subr.mxu0 0.0
        %292 = vmatpush1.xpose.msra.mxu0 0.0
        %293 = vmatprep.subr.mxu0 0.0
        %294 = vmatpush1.xpose.msra.mxu0 0.0
        %295 = vmatprep.subr.mxu0 0.0
        %296 = vmatpush1.xpose.msra.mxu0 0.0
        %297 = vmatprep.subr.mxu0 0.0
        %298 = vmatpush1.xpose.msra.mxu0 0.0
        %299 = vmatprep.subr.mxu0 0.0
        %300 = vmatpush1.xpose.msra.mxu0 0.0
        %301 = vmatprep.subr.mxu0 0.0
        %302 = vmatpush1.xpose.msra.mxu0 0.0
        %303 = vmatprep.subr.mxu0 0.0
        %304 = vmatpush1.xpose.msra.mxu0 0.0
        %305 = vmatprep.subr.mxu0 0.0
        %306 = vmatpush1.xpose.msra.mxu0 0.0
        %307 = vmatprep.subr.mxu0 0.0
        %308 = vmatpush1.xpose.msra.mxu0 0.0
        %309 = vmatprep.subr.mxu0 0.0
        %310 = vmatpush1.xpose.msra.mxu0 0.0
        %311 = vmatprep.subr.mxu0 0.0
        %312 = vmatpush1.xpose.msra.mxu0 0.0
        %313 = vmatprep.subr.mxu0 0.0
        %314 = vmatpush1.xpose.msra.mxu0 0.0
        %315 = vmatprep.subr.mxu0 0.0
        %316 = vmatpush1.xpose.msra.mxu0 0.0
        %317 = vmatprep.subr.mxu0 0.0
        %318 = vmatpush1.xpose.msra.mxu0 0.0
        %319 = vmatprep.subr.mxu0 0.0
        %320 = vmatpush1.xpose.msra.mxu0 0.0
        %321 = vmatprep.subr.mxu0 0.0
        %322 = vmatpush1.xpose.msra.mxu0 0.0
        %323 = vmatprep.subr.mxu0 0.0
        %324 = vmatpush1.xpose.msra.mxu0 0.0
        %325 = vmatprep.subr.mxu0 0.0
        %326 = vmatpush1.xpose.msra.mxu0 0.0
        %327 = vmatprep.mubr.f32.mxu0 0.0
        %328 = vmatmul.mubr.f32.gmra.mrb[0].mxu0 %v246
        %v329 = vpop.f32.mrb[0].mxu0
        %v330 = vadd.f32 0.0, %v329
        %v331 = vpop.f32.mrb[0].mxu0
        %332 = vdwg.mxu0
        %v333 = vmul.f32 %v330, %v254
        %vm334 = vcmask 64512
        %v336 = vsel %vm334, %v333, 0
        %338 = vmatprep.subr.mxu0 0.0
        %339 = vmatpush1.xpose.msra.mxu0 %v336
        %340 = vmatprep.subr.mxu0 0.0
        %341 = vmatpush1.xpose.msra.mxu0 0.0
        %342 = vmatprep.subr.mxu0 0.0
        %343 = vmatpush1.xpose.msra.mxu0 0.0
        %344 = vmatprep.subr.mxu0 0.0
        %345 = vmatpush1.xpose.msra.mxu0 0.0
        %346 = vmatprep.subr.mxu0 0.0
        %347 = vmatpush1.xpose.msra.mxu0 0.0
        %348 = vmatprep.subr.mxu0 0.0
        %349 = vmatpush1.xpose.msra.mxu0 0.0
        %350 = vmatprep.subr.mxu0 0.0
        %351 = vmatpush1.xpose.msra.mxu0 0.0
        %352 = vmatprep.subr.mxu0 0.0
        %353 = vmatpush1.xpose.msra.mxu0 0.0
        %354 = vmatprep.subr.mxu0 0.0
        %355 = vmatpush1.xpose.msra.mxu0 0.0
        %356 = vmatprep.subr.mxu0 0.0
        %357 = vmatpush1.xpose.msra.mxu0 0.0
        %358 = vmatprep.subr.mxu0 0.0
        %359 = vmatpush1.xpose.msra.mxu0 0.0
        %360 = vmatprep.subr.mxu0 0.0
        %361 = vmatpush1.xpose.msra.mxu0 0.0
        %362 = vmatprep.subr.mxu0 0.0
        %363 = vmatpush1.xpose.msra.mxu0 0.0
        %364 = vmatprep.subr.mxu0 0.0
        %365 = vmatpush1.xpose.msra.mxu0 0.0
        %366 = vmatprep.subr.mxu0 0.0
        %367 = vmatpush1.xpose.msra.mxu0 0.0
        %368 = vmatprep.subr.mxu0 0.0
        %369 = vmatpush1.xpose.msra.mxu0 0.0
        %370 = vmatprep.subr.mxu0 0.0
        %371 = vmatpush1.xpose.msra.mxu0 0.0
        %372 = vmatprep.subr.mxu0 0.0
        %373 = vmatpush1.xpose.msra.mxu0 0.0
        %374 = vmatprep.subr.mxu0 0.0
        %375 = vmatpush1.xpose.msra.mxu0 0.0
        %376 = vmatprep.subr.mxu0 0.0
        %377 = vmatpush1.xpose.msra.mxu0 0.0
        %378 = vmatprep.subr.mxu0 0.0
        %379 = vmatpush1.xpose.msra.mxu0 0.0
        %380 = vmatprep.subr.mxu0 0.0
        %381 = vmatpush1.xpose.msra.mxu0 0.0
        %382 = vmatprep.subr.mxu0 0.0
        %383 = vmatpush1.xpose.msra.mxu0 0.0
        %384 = vmatprep.subr.mxu0 0.0
        %385 = vmatpush1.xpose.msra.mxu0 0.0
        %386 = vmatprep.subr.mxu0 0.0
        %387 = vmatpush1.xpose.msra.mxu0 0.0
        %388 = vmatprep.subr.mxu0 0.0
        %389 = vmatpush1.xpose.msra.mxu0 0.0
        %390 = vmatprep.subr.mxu0 0.0
        %391 = vmatpush1.xpose.msra.mxu0 0.0
        %392 = vmatprep.subr.mxu0 0.0
        %393 = vmatpush1.xpose.msra.mxu0 0.0
        %394 = vmatprep.subr.mxu0 0.0
        %395 = vmatpush1.xpose.msra.mxu0 0.0
        %396 = vmatprep.subr.mxu0 0.0
        %397 = vmatpush1.xpose.msra.mxu0 0.0
        %398 = vmatprep.subr.mxu0 0.0
        %399 = vmatpush1.xpose.msra.mxu0 0.0
        %400 = vmatprep.subr.mxu0 0.0
        %401 = vmatpush1.xpose.msra.mxu0 0.0
        %402 = vmatprep.mubr.f32.mxu0 0.0
        %403 = vmatmul.mubr.f32.gmra.mrb[0].mxu0 %v336
        %v404 = vpop.f32.mrb[0].mxu0
        %v405 = vadd.f32 0.0, %v404
        %v406 = vpop.f32.mrb[0].mxu0
        %407 = vdwg.mxu0
        %v408 = vmul.f32 %v333, %v333
        %v409 = vsel %vm334, %v408, 0.0
        %410 = vadd.xlane.f32.xlu0 %v409
        %v411 = vpop.xlane.xlu0 %410
        %v412 = vlaneseq
        %v413 = vand.u32 %v412, 127
        %vm414 = vcmp.eq.s32.totalorder %v239, %v413
        %v415 = vsel %vm414, 1, 0
        %v416 = vcvt.s32.f32 %v415
        %v417 = vmul.f32 %v405, %v416
        %v418 = vsel %vm334, %v417, 0.0
        %v419 = vrot.slane %v418, 4
        %v420 = vadd.f32 %v418, %v419
        %v421 = vrot.slane %v420, 2
        %v422 = vadd.f32 %v420, %v421
        %v423 = vrot.slane %v422, 1
        %v424 = vadd.f32 %v422, %v423
        %vm425 = vcmp.ne.s32.totalorder %v239, %v413
        %v426 = vsel %vm425, 1, 0
        %v427 = vcvt.s32.f32 %v426
        %v428 = vld [vmem:[%s203] sm:$0xff]
        %429 = vxpose.xlu0.b32.start [1/16] %v333, 128
        %430 = vxpose.xlu0.b32.cont [2/16] 0.0, 128
        %431 = vxpose.xlu0.b32.cont [3/16] 0.0, 128
        %432 = vxpose.xlu0.b32.cont [4/16] 0.0, 128
        %433 = vxpose.xlu0.b32.cont [5/16] 0.0, 128
        %434 = vxpose.xlu0.b32.cont [6/16] 0.0, 128
        %435 = vxpose.xlu0.b32.cont [7/16] 0.0, 128
        %436 = vxpose.xlu0.b32.cont [8/16] 0.0, 128
        %437 = vxpose.xlu0.b32.cont [9/16] 0.0, 128
        %438 = vxpose.xlu0.b32.cont [10/16] 0.0, 128
        %439 = vxpose.xlu0.b32.cont [11/16] 0.0, 128
        %440 = vxpose.xlu0.b32.cont [12/16] 0.0, 128
        %441 = vxpose.xlu0.b32.cont [13/16] 0.0, 128
        %442 = vxpose.xlu0.b32.cont [14/16] 0.0, 128
        %443 = vxpose.xlu0.b32.cont [15/16] 0.0, 128
        %444 = vxpose.xlu0.b32.end [16/16] 0.0, 128
        %v445 = vpop.trf.xlu0
        %v446 = vpop.trf.xlu0
        %v447 = vpop.trf.xlu0
        %v448 = vpop.trf.xlu0
        %v449 = vpop.trf.xlu0
        %v450 = vpop.trf.xlu0
        %v451 = vpop.trf.xlu0
        %v452 = vpop.trf.xlu0
        %v453 = vpop.trf.xlu0
        %v454 = vpop.trf.xlu0
        %v455 = vpop.trf.xlu0
        %v456 = vpop.trf.xlu0
        %v457 = vpop.trf.xlu0
        %v458 = vpop.trf.xlu0
        %v459 = vpop.trf.xlu0
        %v460 = vpop.trf.xlu0
        %v462 = vsel %vm334, %v445, 0
        %464 = vmatprep.subr.mxu0 0.0
        %465 = vmatpush1.msra.mxu0 %v246
        %466 = vmatprep.subr.mxu0 0.0
        %467 = vmatpush1.msra.mxu0 0.0
        %468 = vmatprep.subr.mxu0 0.0
        %469 = vmatpush1.msra.mxu0 0.0
        %470 = vmatprep.subr.mxu0 0.0
        %471 = vmatpush1.msra.mxu0 0.0
        %472 = vmatprep.subr.mxu0 0.0
        %473 = vmatpush1.msra.mxu0 0.0
        %474 = vmatprep.subr.mxu0 0.0
        %475 = vmatpush1.msra.mxu0 0.0
        %476 = vmatprep.subr.mxu0 0.0
        %477 = vmatpush1.msra.mxu0 0.0
        %478 = vmatprep.subr.mxu0 0.0
        %479 = vmatpush1.msra.mxu0 0.0
        %480 = vmatprep.subr.mxu0 0.0
        %481 = vmatpush1.msra.mxu0 0.0
        %482 = vmatprep.subr.mxu0 0.0
        %483 = vmatpush1.msra.mxu0 0.0
        %484 = vmatprep.subr.mxu0 0.0
        %485 = vmatpush1.msra.mxu0 0.0
        %486 = vmatprep.subr.mxu0 0.0
        %487 = vmatpush1.msra.mxu0 0.0
        %488 = vmatprep.subr.mxu0 0.0
        %489 = vmatpush1.msra.mxu0 0.0
        %490 = vmatprep.subr.mxu0 0.0
        %491 = vmatpush1.msra.mxu0 0.0
        %492 = vmatprep.subr.mxu0 0.0
        %493 = vmatpush1.msra.mxu0 0.0
        %494 = vmatprep.subr.mxu0 0.0
        %495 = vmatpush1.msra.mxu0 0.0
        %496 = vmatprep.subr.mxu0 0.0
        %497 = vmatpush1.msra.mxu0 0.0
        %498 = vmatprep.subr.mxu0 0.0
        %499 = vmatpush1.msra.mxu0 0.0
        %500 = vmatprep.subr.mxu0 0.0
        %501 = vmatpush1.msra.mxu0 0.0
        %502 = vmatprep.subr.mxu0 0.0
        %503 = vmatpush1.msra.mxu0 0.0
        %504 = vmatprep.subr.mxu0 0.0
        %505 = vmatpush1.msra.mxu0 0.0
        %506 = vmatprep.subr.mxu0 0.0
        %507 = vmatpush1.msra.mxu0 0.0
        %508 = vmatprep.subr.mxu0 0.0
        %509 = vmatpush1.msra.mxu0 0.0
        %510 = vmatprep.subr.mxu0 0.0
        %511 = vmatpush1.msra.mxu0 0.0
        %512 = vmatprep.subr.mxu0 0.0
        %513 = vmatpush1.msra.mxu0 0.0
        %514 = vmatprep.subr.mxu0 0.0
        %515 = vmatpush1.msra.mxu0 0.0
        %516 = vmatprep.subr.mxu0 0.0
        %517 = vmatpush1.msra.mxu0 0.0
        %518 = vmatprep.subr.mxu0 0.0
        %519 = vmatpush1.msra.mxu0 0.0
        %520 = vmatprep.subr.mxu0 0.0
        %521 = vmatpush1.msra.mxu0 0.0
        %522 = vmatprep.subr.mxu0 0.0
        %523 = vmatpush1.msra.mxu0 0.0
        %524 = vmatprep.subr.mxu0 0.0
        %525 = vmatpush1.msra.mxu0 0.0
        %526 = vmatprep.subr.mxu0 0.0
        %527 = vmatpush1.msra.mxu0 0.0
        %528 = vmatprep.mubr.f32.mxu0 0.0
        %529 = vmatmul.mubr.f32.gmra.mrb[0].mxu0 %v462
        %v530 = vpop.f32.mrb[0].mxu0
        %v531 = vadd.f32 0.0, %v530
        %v532 = vpop.f32.mrb[0].mxu0
        %533 = vdwg.mxu0
        %v534 = vsub.f32 %v262, %v531
        %v535 = vmul.f32 %v534, %v534
        %v536 = vrot.slane %v535, 4
        %v537 = vadd.f32 %v535, %v536
        %v538 = vrot.slane %v537, 2
        %v539 = vadd.f32 %v537, %v538
        %v540 = vrot.slane %v539, 1
        %v541 = vadd.f32 %v539, %v540
        %v542 = vmul.f32 %v541, 0.125
        %vm543 = vcmp.lt.f32.partialorder %v542, 0.001
        %v544 = vsel %vm543, 0.0, %v542
        %v545 = vmul.f32 %v428, %v254
        %547 = vset.pattern.permute.xlu0 8
        %548 = vperm.xlu0 %547, %v545
        %v549 = vpop.permute.xlu0 %548
        %v551 = vmul.f32 %v246, %v549
        %v552 = vrot.slane %v551, 4
        %v553 = vadd.f32 %v551, %v552
        %v554 = vrot.slane %v553, 2
        %v555 = vadd.f32 %v553, %v554
        %v556 = vrot.slane %v555, 1
        %v557 = vadd.f32 %v555, %v556
        %v558 = vmul.f32 %v544, %v557
        %vm559 = vcmask 1040384
        %v560 = vsel %vm559, %v558, 0.0
        %561 = vadd.xlane.f32.xlu0 %v560
        %v562 = vpop.xlane.xlu0 %561
        %v563 = vrot.slane %v562, 4
        %v564 = vadd.f32 %v562, %v563
        %v565 = vrot.slane %v564, 2
        %v566 = vadd.f32 %v564, %v565
        %v567 = vrot.slane %v566, 1
        %v568 = vadd.f32 %v566, %v567
        %s569 = vtos %v568
        %v570 = vstv %s569
        %v571 = vadd.f32 %v411, %v424
        %v572 = vmul.f32 %v405, 2.0
        %v573 = vsub.f32 %v571, %v572
        %v574 = vmax.f32 %v573, 0.0
        %v575 = vmul.f32 %v574, 0.125
        %v576 = vmul.f32 %v575, %v427
        %v577 = vsub.f32 0.0, %v576
        %v578 = vmul.f32 %v577, 1.442695
        %v579 = vpow.pop %v578
        %vm580 = vcmp.lt.f32.partialorder %v579, 0.001
        %v581 = vsel %vm580, 0.0, %v428
        %v582 = vmul.f32 %v579, %v581
        %v584 = vsel %vm334, %v582, 0
        %586 = vmatprep.subr.mxu0 0.0
        %587 = vmatpush1.msra.mxu0 %v251
        %588 = vmatprep.subr.mxu0 0.0
        %589 = vmatpush1.msra.mxu0 0.0
        %590 = vmatprep.subr.mxu0 0.0
        %591 = vmatpush1.msra.mxu0 0.0
        %592 = vmatprep.subr.mxu0 0.0
        %593 = vmatpush1.msra.mxu0 0.0
        %594 = vmatprep.subr.mxu0 0.0
        %595 = vmatpush1.msra.mxu0 0.0
        %596 = vmatprep.subr.mxu0 0.0
        %597 = vmatpush1.msra.mxu0 0.0
        %598 = vmatprep.subr.mxu0 0.0
        %599 = vmatpush1.msra.mxu0 0.0
        %600 = vmatprep.subr.mxu0 0.0
        %601 = vmatpush1.msra.mxu0 0.0
        %602 = vmatprep.subr.mxu0 0.0
        %603 = vmatpush1.msra.mxu0 0.0
        %604 = vmatprep.subr.mxu0 0.0
        %605 = vmatpush1.msra.mxu0 0.0
        %606 = vmatprep.subr.mxu0 0.0
        %607 = vmatpush1.msra.mxu0 0.0
        %608 = vmatprep.subr.mxu0 0.0
        %609 = vmatpush1.msra.mxu0 0.0
        %610 = vmatprep.subr.mxu0 0.0
        %611 = vmatpush1.msra.mxu0 0.0
        %612 = vmatprep.subr.mxu0 0.0
        %613 = vmatpush1.msra.mxu0 0.0
        %614 = vmatprep.subr.mxu0 0.0
        %615 = vmatpush1.msra.mxu0 0.0
        %616 = vmatprep.subr.mxu0 0.0
        %617 = vmatpush1.msra.mxu0 0.0
        %618 = vmatprep.subr.mxu0 0.0
        %619 = vmatpush1.msra.mxu0 0.0
        %620 = vmatprep.subr.mxu0 0.0
        %621 = vmatpush1.msra.mxu0 0.0
        %622 = vmatprep.subr.mxu0 0.0
        %623 = vmatpush1.msra.mxu0 0.0
        %624 = vmatprep.subr.mxu0 0.0
        %625 = vmatpush1.msra.mxu0 0.0
        %626 = vmatprep.subr.mxu0 0.0
        %627 = vmatpush1.msra.mxu0 0.0
        %628 = vmatprep.subr.mxu0 0.0
        %629 = vmatpush1.msra.mxu0 0.0
        %630 = vmatprep.subr.mxu0 0.0
        %631 = vmatpush1.msra.mxu0 0.0
        %632 = vmatprep.subr.mxu0 0.0
        %633 = vmatpush1.msra.mxu0 0.0
        %634 = vmatprep.subr.mxu0 0.0
        %635 = vmatpush1.msra.mxu0 0.0
        %636 = vmatprep.subr.mxu0 0.0
        %637 = vmatpush1.msra.mxu0 0.0
        %638 = vmatprep.subr.mxu0 0.0
        %639 = vmatpush1.msra.mxu0 0.0
        %640 = vmatprep.subr.mxu0 0.0
        %641 = vmatpush1.msra.mxu0 0.0
        %642 = vmatprep.subr.mxu0 0.0
        %643 = vmatpush1.msra.mxu0 0.0
        %644 = vmatprep.subr.mxu0 0.0
        %645 = vmatpush1.msra.mxu0 0.0
        %646 = vmatprep.subr.mxu0 0.0
        %647 = vmatpush1.msra.mxu0 0.0
        %648 = vmatprep.subr.mxu0 0.0
        %649 = vmatpush1.msra.mxu0 0.0
        %650 = vmatprep.mubr.f32.mxu0 0.0
        %651 = vmatmul.mubr.f32.gmra.mrb[0].mxu0 %v584
        %v652 = vpop.f32.mrb[0].mxu0
        %v653 = vadd.f32 0.0, %v652
        %v654 = vpop.f32.mrb[0].mxu0
        %655 = vdwg.mxu0
        %v656 = vmul.f32 %v653, %v251
        %vm657 = vcmask 7168
        %v658 = vsel %vm657, %v656, 0.0
        %659 = vadd.xlane.f32.xlu0 %v658
        %v660 = vpop.xlane.xlu0 %659
        %v661 = vrot.slane %v660, 4
        %v662 = vadd.f32 %v660, %v661
        %v663 = vrot.slane %v662, 2
        %v664 = vadd.f32 %v662, %v663
        %v665 = vrot.slane %v664, 1
        %v666 = vadd.f32 %v664, %v665
        %s667 = vtos %v666
        %v668 = vstv %s667
        %v669 = vmul.f32 %v260, 10.0
        %v670 = vsub.f32 %v668, %v669
        %v671 = vadd.f32 %v260, 1e-06
        %v672 = vrcp.pop %v671
        %v673 = vmul.f32 %v570, %v672
        %v674 = vadd.f32 %v673, 0.0
        %v675 = vsub.f32 %v260, 1.0
        %v676 = vmul.f32 %v675, %v260
        %v677 = vadd.f32 %v676, 1e-06
        %v678 = vrcp.pop %v677
        %v679 = vmul.f32 %v670, %v678
        %v680 = vmul.f32 %v679, 0.5
        %v681 = vadd.f32 %v680, 0.0
        %vm682 = vcmp.eq.s32.totalorder %v239, 0
        %vm683 = vcmp.eq.s32.totalorder %v239, 1
        %v684 = vsel %vm683, %v674, 0.0
        %v685 = vsel %vm682, %v681, %v684
        %686 = vst [vmem:[%s233] sm:$0xff] %v685
        %s687 = sand.u32 %s109, 1
        %s688 = scalar_lea.sflag [#allocation4], %s687
        %s689 = sand.u32 %s109, 1
        %s690 = smul.addr %s689, 8
        %s691 = scalar_lea.vmem [#allocation7], %s690
        // Predicated region
        $region41: #{tpu_custom_call.1} parent=31 // pred_check
          %p692 = pneg %p119
        $region42: #{tpu_custom_call.1} parent=31 // pred_check_branch
          %694 = sbr.rel (%p692) target = $region44
        $region43: #{tpu_custom_call.1} parent=31 // pred_region
          %s696 = ssub.s32 128, 128
          %697 = vsyncadd %s688, %s696
          %s698 = smul.addr %s23, 128
          %s699 = scalar_lea.hbm %s3, %s698
          %s701 = sshll.u32 %s691, 4
          %s702 = int_to_ptr.vmem [resolvable:$true] %s701
          %704 = dma.vmem_to_hbm [thread:$0]  %s702, 128, %s699, %s688
        $region44: #{tpu_custom_call.1} parent=31 // pred_fallthru
          _
      $region32: #{tpu_custom_call.1} parent=5 // pred_fallthru
        _
      %p705 = scmp.le.s32.totalorder 2, %s18
      // Predicated region
      $region45: #{tpu_custom_call.1} parent=5 // pred_check
        %p706 = pneg %p705
      $region46: #{tpu_custom_call.1} parent=5 // pred_check_branch
        %708 = sbr.rel (%p706) target = $region48
      $region47: #{tpu_custom_call.1} parent=5 // pred_region
        %s709 = ssub.s32 %s18, 2
        // Predicated region
        $region49: #{tpu_custom_call.1} parent=47 // pred_check
          %p710 = pneg %p125
        $region50: #{tpu_custom_call.1} parent=47 // pred_check_branch
          %712 = sbr.rel (%p710) target = $region52
        $region51: #{tpu_custom_call.1} parent=47 // pred_region
          %s713 = sand.u32 %s110, 1
          %s714 = scalar_lea.sflag [#allocation4], %s713
          %s715 = sand.u32 %s110, 1
          %s716 = smul.addr %s715, 8
          %s717 = scalar_lea.vmem [#allocation7], %s716
          %718 = dma.done %s714, 128
        $region52: #{tpu_custom_call.1} parent=47 // pred_fallthru
          _
      $region48: #{tpu_custom_call.1} parent=5 // pred_fallthru
        _
    $region6: #{tpu_custom_call.1} parent=1 // loop_footer
      %s22 = sadd.s32 1, %s18
    $region7: #{tpu_custom_call.1} parent=1 // loop_footer_branch
      %17 = sbr.rel target = $region3
    $region8: #{tpu_custom_call.1} parent=1 // loop_exit
      _
    %719 = vsyncpa [#allocation3], 1
    %s720 = scalar_lea.sflag [#allocation3], 1
    %721 = vsyncpa %s720, 1
    %722 = vsyncpa [#allocation6], 1
    %s723 = scalar_lea.sflag [#allocation6], 1
    %724 = vsyncpa %s723, 1
    %725 = vsyncpa [#allocation4], 1
    %s726 = scalar_lea.sflag [#allocation4], 1
    %727 = vsyncpa %s726, 1

</llo_original>
